<compile_context>
chip_gen: v5e
topology: v5e:2x2
jax: 0.10.0
libtpu: 0.0.40
codegen_flags: <defaults>
</compile_context>

<pallas_src>
from typing import NamedTuple

import jax
import jax.numpy as jnp
from jax.experimental import pallas as pl
from jax.experimental.pallas import tpu as pltpu


def _round_up(n, m):
    return ((n + m - 1) // m) * m


def _multi_tensorcore_chip():
    """Heuristic: does this chip have >1 TensorCore (v4/v5p/v7x)?"""
    try:
        kind = jax.devices()[0].device_kind.lower()
    except Exception:
        return False
    return any(t in kind for t in ("v7", "v4", "v5p", "v5 p"))


def _auto_batch_tile(batch, max_tile=2048):
    """Pick a batch tile: one big tile on 1-TC chips, >=2 steps on multi-TC."""
    b_ceil = _round_up(max(batch, 16), 16)
    if _multi_tensorcore_chip() and b_ceil >= 32:
        tile = _round_up(pl.cdiv(b_ceil, 2), 16)   # >=2 "parallel" grid steps
    else:
        tile = b_ceil                              # single grid step
    return min(tile, max_tile)


class DNDParams(NamedTuple):
    """Pre-padded, pre-cast parameters (build once, reuse every forward)."""
    w1: jax.Array        # (S, H_pad)      bf16
    b1: jax.Array        # (1, H_pad)      f32   (pad lanes = 0)
    wp: jax.Array        # (H_pad, A_pad)  bf16
    bp: jax.Array        # (1, A_pad)      f32   (pad lanes = -1e30)
    state_sz: int
    hidden_size: int
    action_num: int


def prepare_dnd_params(w1, b1, wp, bp):
    """Pad hidden/action dims to lane multiples and cast weights to bf16.

    Weights are stored as (in_features, out_features), i.e. transposed relative
    to torch.nn.Linear.weight, so the kernel does plain `x @ W` on the MXU.
    Call this ONCE at init; do not rebuild per forward.
    """
    S, H = w1.shape
    A = wp.shape[1]
    # NOTE: if H/A are ever scaled up, prefer 256-multiples here (v6e/v7x MXU
    # is 256-wide); at H=64/A=6 a single 128 lane-tile is already optimal.
    H_pad = _round_up(H, 128)
    A_pad = _round_up(A, 128)

    w1_p = jnp.zeros((S, H_pad), jnp.bfloat16).at[:, :H].set(
        jnp.asarray(w1, jnp.bfloat16))
    b1_p = jnp.zeros((1, H_pad), jnp.float32).at[:, :H].set(
        jnp.asarray(b1, jnp.float32).reshape(1, H))
    wp_p = jnp.zeros((H_pad, A_pad), jnp.bfloat16).at[:H, :A].set(
        jnp.asarray(wp, jnp.bfloat16))
    # Padded action lanes get a huge negative bias so exp() underflows to 0.
    bp_p = jnp.full((1, A_pad), -1e30, jnp.float32).at[:, :A].set(
        jnp.asarray(bp, jnp.float32).reshape(1, A))
    return DNDParams(w1_p, b1_p, wp_p, bp_p, S, H, A)


def _dnd_estimator_kernel(x_ref, w1_ref, b1_ref, wp_ref, bp_ref,
                          probs_ref, h_ref):
    # --- affine1 + ReLU: bf16 MXU inputs, f32 accumulation ---
    h = jnp.dot(x_ref[...], w1_ref[...], preferred_element_type=jnp.float32)
    h = jnp.maximum(h + b1_ref[...], 0.0)
    h_bf = h.astype(jnp.bfloat16)
    # Store h (bf16) before the policy matmul so the vector-store slot overlaps
    # the second MXU pass (matters most on v5e's single vst slot).
    h_ref[...] = h_bf

    # --- discrete policy head: linear + softmax (f32 math) ---
    logits = jnp.dot(h_bf, wp_ref[...], preferred_element_type=jnp.float32)
    logits = logits + bp_ref[...]              # padded lanes carry -1e30 bias
    m = jnp.max(logits, axis=-1, keepdims=True)
    e = jnp.exp(logits - m)                    # exp(pad) underflows to exactly 0
    denom = jnp.sum(e, axis=-1, keepdims=True)
    probs_ref[...] = (e / denom).astype(probs_ref.dtype)   # exact reciprocal


def dnd_estimator_forward(x, params: DNDParams, *, batch_tile=None, trim=False):
    """Fused (linear -> relu -> linear -> softmax) Pallas kernel, batched.

    Returns (probs, value, h) matching DNDEstimator.forward on the
    `value.ready == False` path.  With trim=False (default, fastest) outputs are
    padded: probs is (B_pad, A_pad) with lanes >= action_num exactly 0 and rows
    >= B meaningless; h is (B_pad, H_pad) bf16.  With trim=True they are sliced
    back to (B, action_num) / (B, hidden_size).
    """
    B, S = x.shape
    assert S == params.state_sz, "state size mismatch"
    H_pad = params.w1.shape[1]
    A_pad = params.wp.shape[1]

    if batch_tile is None:
        batch_tile = _auto_batch_tile(B)
    batch_tile = _round_up(batch_tile, 16)
    B_pad = _round_up(B, batch_tile)

    x_bf = x.astype(jnp.bfloat16)
    if B_pad != B:
        x_bf = jnp.zeros((B_pad, S), jnp.bfloat16).at[:B].set(x_bf)

    grid = (B_pad // batch_tile,)

    probs_p, h_p = pl.pallas_call(
        _dnd_estimator_kernel,
        out_shape=(
            jax.ShapeDtypeStruct((B_pad, A_pad), jnp.float32),   # policy probs
            jax.ShapeDtypeStruct((B_pad, H_pad), jnp.bfloat16),  # hidden h
        ),
        grid=grid,
        in_specs=[
            # x: full-extent (unpadded) state dim in the last axis.
            pl.BlockSpec((batch_tile, S), lambda i: (i, 0)),
            # Weights/biases are grid-resident: constant block index, single
            # buffer (no pointless double-buffering).
            pl.BlockSpec((S, H_pad), lambda i: (0, 0),
                         pipeline_mode=pl.Buffered(1)),
            pl.BlockSpec((1, H_pad), lambda i: (0, 0),
                         pipeline_mode=pl.Buffered(1)),
            pl.BlockSpec((H_pad, A_pad), lambda i: (0, 0),
                         pipeline_mode=pl.Buffered(1)),
            pl.BlockSpec((1, A_pad), lambda i: (0, 0),
                         pipeline_mode=pl.Buffered(1)),
        ],
        out_specs=(
            pl.BlockSpec((batch_tile, A_pad), lambda i: (i, 0)),
            pl.BlockSpec((batch_tile, H_pad), lambda i: (i, 0)),
        ),
        compiler_params=pltpu.CompilerParams(
            dimension_semantics=("parallel",),   # megacore sharding on multi-TC
        ),
    )(x_bf, params.w1, params.b1, params.wp, params.bp)

    # DND is not ready on the first forward -> constant value, as in PyTorch.
    value = jnp.zeros((1, 1), dtype=jnp.float32)

    if trim:
        return (probs_p[:B, :params.action_num], value,
                h_p[:B, :params.hidden_size])
    return probs_p, value, h_p


def _init_raw_params(key, state_sz, hidden_size, action_num):
    k1, k2, k3, k4 = jax.random.split(key, 4)
    # Deterministic small-scale init (synthetic weights, not a checkpoint).
    w1 = 0.1 * jax.random.normal(k1, (state_sz, hidden_size), jnp.float32)
    b1 = 0.1 * jax.random.normal(k2, (1, hidden_size), jnp.float32)
    wp = 0.1 * jax.random.normal(k3, (hidden_size, action_num), jnp.float32)
    bp = 0.1 * jax.random.normal(k4, (1, action_num), jnp.float32)
    return w1, b1, wp, bp


if __name__ == "__main__":
    # Shapes consistent with the module: state_sz=16, hidden_size=64 (module
    # default), 6 discrete actions, batch of 256.
    B, state_sz, hidden_size, action_num = 256, 16, 64, 6

    key = jax.random.PRNGKey(0)
    kx, kp = jax.random.split(key)
    x = jax.random.normal(kx, (B, state_sz), jnp.float32)
    w1, b1, wp, bp = _init_raw_params(kp, state_sz, hidden_size, action_num)

    # Pad/cast weights ONCE (hoisted out of the step loop).
    params = prepare_dnd_params(w1, b1, wp, bp)

    # Forward with auto tiling (grid=(1,) on 1-TC chips, 2 steps on multi-TC).
    probs_p, value, h_p = dnd_estimator_forward(x, params)
    jax.block_until_ready((probs_p, value, h_p))

    # Also exercise the multi-step grid path explicitly and check consistency.
    probs_p2, _, h_p2 = dnd_estimator_forward(x, params, batch_tile=128)
    jax.block_until_ready((probs_p2, h_p2))

    # --- correctness checks (slicing here is test-only) ---
    probs = probs_p[:B, :action_num]
    h = h_p[:B, :hidden_size].astype(jnp.float32)

    # Reference in plain JAX, matching the kernel's bf16-in / f32-acc precision.
    x_bf = x.astype(jnp.bfloat16)
    h_ref = jnp.maximum(
        jnp.dot(x_bf, w1.astype(jnp.bfloat16),
                preferred_element_type=jnp.float32) + b1, 0.0)
    logits_ref = jnp.dot(h_ref.astype(jnp.bfloat16), wp.astype(jnp.bfloat16),
                         preferred_element_type=jnp.float32) + bp
    probs_ref = jax.nn.softmax(logits_ref, axis=-1)

    assert probs.shape == (B, action_num)
    assert h.shape == (B, hidden_size)
    # h is emitted in bf16 -> bf16 rounding tolerance vs the f32 reference.
    assert jnp.allclose(h, h_ref, atol=2e-2), "hidden mismatch"
    assert jnp.allclose(probs, probs_ref, atol=5e-3), "probs mismatch"
    # Exact reciprocal -> rows sum to 1 to f32 precision.
    assert jnp.allclose(jnp.sum(probs, axis=-1), 1.0, atol=1e-4), \
        "probs not normalized"
    # Padded action lanes are exactly zero (safe to consume padded output).
    assert bool(jnp.all(probs_p[:B, action_num:] == 0.0)), "padded lanes nonzero"
    # Different tilings agree.
    assert jnp.allclose(probs_p[:B], probs_p2[:B], atol=1e-6), "tile mismatch"
    assert jnp.allclose(h_p[:B].astype(jnp.float32),
                        h_p2[:B].astype(jnp.float32), atol=1e-6), "tile mismatch"
    assert value.shape == (1, 1) and float(value[0, 0]) == 0.0

    print("KERNEL_OK")
</pallas_src>

<mosaic_0001>
module attributes {stable_mosaic.version = 11 : i64} {
  func.func @_dnd_estimator_kernel(%arg0: i32, %arg1: memref<256x16xbf16, #tpu.memory_space<vmem>>, %arg2: memref<16x128xbf16, #tpu.memory_space<vmem>>, %arg3: memref<1x128xf32, #tpu.memory_space<vmem>>, %arg4: memref<128x128xbf16, #tpu.memory_space<vmem>>, %arg5: memref<1x128xf32, #tpu.memory_space<vmem>>, %arg6: memref<256x128xf32, #tpu.memory_space<vmem>>, %arg7: memref<256x128xbf16, #tpu.memory_space<vmem>>) attributes {dimension_semantics = [#tpu.dimension_semantics<parallel>], iteration_bounds = array<i64: 1>, scalar_prefetch = 0 : i64, scratch_operands = 0 : i64, tpu.core_type = #tpu.core_type<tc>, window_params = [{transform_indices = @transform_0, window_bounds = array<i64: 256, 16>}, {pipeline_mode = #tpu.pipeline_mode<synchronous>, transform_indices = @transform_1, window_bounds = array<i64: 16, 128>}, {pipeline_mode = #tpu.pipeline_mode<synchronous>, transform_indices = @transform_2, window_bounds = array<i64: 1, 128>}, {pipeline_mode = #tpu.pipeline_mode<synchronous>, transform_indices = @transform_3, window_bounds = array<i64: 128, 128>}, {pipeline_mode = #tpu.pipeline_mode<synchronous>, transform_indices = @transform_4, window_bounds = array<i64: 1, 128>}, {transform_indices = @transform_5, window_bounds = array<i64: 256, 128>}, {transform_indices = @transform_6, window_bounds = array<i64: 256, 128>}]} {
    %c0 = arith.constant 0 : index
    %c0_0 = arith.constant 0 : index
    %0 = vector.load %arg1[%c0, %c0_0] : memref<256x16xbf16, #tpu.memory_space<vmem>>, vector<256x16xbf16>
    %c0_1 = arith.constant 0 : index
    %c0_2 = arith.constant 0 : index
    %1 = vector.load %arg2[%c0_1, %c0_2] : memref<16x128xbf16, #tpu.memory_space<vmem>>, vector<16x128xbf16>
    %cst = arith.constant dense<0.000000e+00> : vector<256x128xf32>
    %2 = tpu.matmul %0, %1, %cst {dimension_numbers = #tpu.dot_dimension_numbers<[1], [0], [0], [1], [0, 0, 1, 1], [], []>} : vector<256x16xbf16>, vector<16x128xbf16>, vector<256x128xf32> -> vector<256x128xf32>
    %c0_3 = arith.constant 0 : index
    %c0_4 = arith.constant 0 : index
    %3 = vector.load %arg3[%c0_3, %c0_4] : memref<1x128xf32, #tpu.memory_space<vmem>>, vector<1x128xf32>
    %4 = vector.broadcast %3 : vector<1x128xf32> to vector<256x128xf32>
    %5 = arith.addf %2, %4 : vector<256x128xf32>
    %cst_5 = arith.constant 0.000000e+00 : f32
    %6 = vector.broadcast %cst_5 : f32 to vector<256x128xf32>
    %7 = arith.maximumf %5, %6 : vector<256x128xf32>
    %8 = arith.truncf %7 : vector<256x128xf32> to vector<256x128xbf16>
    %c0_6 = arith.constant 0 : index
    %c0_7 = arith.constant 0 : index
    %9 = vector.load %arg7[%c0_6, %c0_7] : memref<256x128xbf16, #tpu.memory_space<vmem>>, vector<256x128xbf16>
    tpu.vector_store %arg7[%c0_6, %c0_7], %8 {strides = array<i32>} : memref<256x128xbf16, #tpu.memory_space<vmem>>, vector<256x128xbf16>,
    %c0_8 = arith.constant 0 : index
    %c0_9 = arith.constant 0 : index
    %10 = vector.load %arg4[%c0_8, %c0_9] : memref<128x128xbf16, #tpu.memory_space<vmem>>, vector<128x128xbf16>
    %cst_10 = arith.constant dense<0.000000e+00> : vector<256x128xf32>
    %11 = tpu.matmul %8, %10, %cst_10 {dimension_numbers = #tpu.dot_dimension_numbers<[1], [0], [0], [1], [0, 0, 1, 1], [], []>} : vector<256x128xbf16>, vector<128x128xbf16>, vector<256x128xf32> -> vector<256x128xf32>
    %c0_11 = arith.constant 0 : index
    %c0_12 = arith.constant 0 : index
    %12 = vector.load %arg5[%c0_11, %c0_12] : memref<1x128xf32, #tpu.memory_space<vmem>>, vector<1x128xf32>
    %13 = vector.broadcast %12 : vector<1x128xf32> to vector<256x128xf32>
    %14 = arith.addf %11, %13 : vector<256x128xf32>
    %cst_13 = arith.constant dense<0xFF800000> : vector<256xf32>
    %15 = vector.multi_reduction <maximumf>, %14, %cst_13 [1] : vector<256x128xf32> to vector<256xf32>
    %16 = vector.shape_cast %15 : vector<256xf32> to vector<256x1xf32>
    %17 = vector.broadcast %16 : vector<256x1xf32> to vector<256x128xf32>
    %18 = arith.subf %14, %17 : vector<256x128xf32>
    %19 = math.exp %18 : vector<256x128xf32>
    %cst_14 = arith.constant dense<0.000000e+00> : vector<256xf32>
    %20 = vector.multi_reduction <add>, %19, %cst_14 [1] : vector<256x128xf32> to vector<256xf32>
    %21 = vector.shape_cast %20 : vector<256xf32> to vector<256x1xf32>
    %22 = vector.broadcast %21 : vector<256x1xf32> to vector<256x128xf32>
    %23 = arith.divf %19, %22 : vector<256x128xf32>
    %c0_15 = arith.constant 0 : index
    %c0_16 = arith.constant 0 : index
    %24 = vector.load %arg6[%c0_15, %c0_16] : memref<256x128xf32, #tpu.memory_space<vmem>>, vector<256x128xf32>
    tpu.vector_store %arg6[%c0_15, %c0_16], %23 {strides = array<i32>} : memref<256x128xf32, #tpu.memory_space<vmem>>, vector<256x128xf32>,
    return
  }
  func.func @transform_0(%arg0: i32) -> (i32, i32) {
    %c0_i32 = arith.constant 0 : i32
    %c0_i32_0 = arith.constant 0 : i32
    return %arg0, %c0_i32 : i32, i32
  }
  func.func @transform_1(%arg0: i32) -> (i32, i32) {
    %c0_i32 = arith.constant 0 : i32
    %c0_i32_0 = arith.constant 0 : i32
    %c0_i32_1 = arith.constant 0 : i32
    return %c0_i32, %c0_i32_0 : i32, i32
  }
  func.func @transform_2(%arg0: i32) -> (i32, i32) {
    %c0_i32 = arith.constant 0 : i32
    %c0_i32_0 = arith.constant 0 : i32
    %c0_i32_1 = arith.constant 0 : i32
    return %c0_i32, %c0_i32_0 : i32, i32
  }
  func.func @transform_3(%arg0: i32) -> (i32, i32) {
    %c0_i32 = arith.constant 0 : i32
    %c0_i32_0 = arith.constant 0 : i32
    %c0_i32_1 = arith.constant 0 : i32
    return %c0_i32, %c0_i32_0 : i32, i32
  }
  func.func @transform_4(%arg0: i32) -> (i32, i32) {
    %c0_i32 = arith.constant 0 : i32
    %c0_i32_0 = arith.constant 0 : i32
    %c0_i32_1 = arith.constant 0 : i32
    return %c0_i32, %c0_i32_0 : i32, i32
  }
  func.func @transform_5(%arg0: i32) -> (i32, i32) {
    %c0_i32 = arith.constant 0 : i32
    %c0_i32_0 = arith.constant 0 : i32
    return %arg0, %c0_i32 : i32, i32
  }
  func.func @transform_6(%arg0: i32) -> (i32, i32) {
    %c0_i32 = arith.constant 0 : i32
    %c0_i32_0 = arith.constant 0 : i32
    return %arg0, %c0_i32 : i32, i32
  }
}

</mosaic_0001>

<llo_original>
// kernel: tpu_custom_call.1
$region0: #{tpu_custom_call.1}
  #allocation0 [shape = 'u32[]', space=smem, size = 0x4, offset = 0x4, fixed_abs, tag = 'smem constant byte address 0x4 - core index']
  #allocation1 [shape = 'u32[72,128]{1,0:T(1,128)}', space=vmem, size = 0x9000, scoped, tag = 'internal scratch']
  %s0 = inlined_call_operand.vmem [shape: bf16[256,16], index: 0, kind: input, shape index: {}]
  %s1 = inlined_call_operand.vmem [shape: bf16[16,128], index: 1, kind: input, shape index: {}]
  %s2 = inlined_call_operand.vmem [shape: f32[1,128], index: 2, kind: input, shape index: {}]
  %s3 = inlined_call_operand.vmem [shape: bf16[128,128], index: 3, kind: input, shape index: {}]
  %s4 = inlined_call_operand.vmem [shape: f32[1,128], index: 4, kind: input, shape index: {}]
  %s5 = inlined_call_operand.hbm [shape: f32[256,128], index: 5, kind: output, shape index: {0}]
  %s6 = inlined_call_operand.hbm [shape: bf16[256,128], index: 6, kind: output, shape index: {1}]
  %7 = xla_tuple %s5, %s6
  %s8 = sld [smem:[#allocation0]]
  $region38: #{tpu_custom_call.1} parent=0
    _
  %s10 = ssub.s32 1, %s8
  %s11 = scalar_select 0, %s10, %s8
  $region1: #{tpu_custom_call.1} parent=0
    #allocation2 [shape = 'u8[131072]{0}', space=vmem, size = 0x20000, scoped, tag = 'output window, operand 0, single buffered']
    #allocation3 [shape = 's32[1]{0}', space=sflag, size = 0x4, scoped, tag = 'scoped memory for tpu_custom_call.1']
    #allocation4 [shape = 'u8[65536]{0}', space=vmem, size = 0x10000, scoped, tag = 'output window, operand 1, single buffered']
    #allocation5 [shape = 's32[1]{0}', space=sflag, size = 0x4, scoped, tag = 'scoped memory for tpu_custom_call.1']
    %12 = vsyncpa [#allocation3], 0
    %13 = vsyncpa [#allocation5], 0
    // Predicated region
    $region2: #{tpu_custom_call.1} parent=1 // pred_check
      _
    $region3: #{tpu_custom_call.1} parent=1 // pred_check_branch
      %15 = sbr.rel (0) target = $region5
    $region4: #{tpu_custom_call.1} parent=1 // pred_region
      _
    $region5: #{tpu_custom_call.1} parent=1 // pred_fallthru
      _
    // Predicated region
    $region6: #{tpu_custom_call.1} parent=1 // pred_check
      _
    $region7: #{tpu_custom_call.1} parent=1 // pred_check_branch
      %17 = sbr.rel (0) target = $region9
    $region8: #{tpu_custom_call.1} parent=1 // pred_region
      _
    $region9: #{tpu_custom_call.1} parent=1 // pred_fallthru
      _
    // Predicated region
    $region10: #{tpu_custom_call.1} parent=1 // pred_check
      _
    $region11: #{tpu_custom_call.1} parent=1 // pred_check_branch
      %19 = sbr.rel (0) target = $region13
    $region12: #{tpu_custom_call.1} parent=1 // pred_region
      _
    $region13: #{tpu_custom_call.1} parent=1 // pred_fallthru
      _
    // Predicated region
    $region14: #{tpu_custom_call.1} parent=1 // pred_check
      _
    $region15: #{tpu_custom_call.1} parent=1 // pred_check_branch
      %21 = sbr.rel (0) target = $region17
    $region16: #{tpu_custom_call.1} parent=1 // pred_region
      _
    $region17: #{tpu_custom_call.1} parent=1 // pred_fallthru
      _
    // Predicated region
    $region18: #{tpu_custom_call.1} parent=1 // pred_check
      _
    $region19: #{tpu_custom_call.1} parent=1 // pred_check_branch
      %23 = sbr.rel (0) target = $region21
    $region20: #{tpu_custom_call.1} parent=1 // pred_region
      _
    $region21: #{tpu_custom_call.1} parent=1 // pred_fallthru
      _
    %v25 = vld [vmem:[%s0] sm:$0xf]
    %v26 = vld [vmem:[%s0 + $0x4] sm:$0xf]
    %v27 = vld [vmem:[%s0 + $0x8] sm:$0xf]
    %v28 = vld [vmem:[%s0 + $0xc] sm:$0xf]
    %v29 = vld [vmem:[%s0 + $0x10] sm:$0xf]
    %v30 = vld [vmem:[%s0 + $0x14] sm:$0xf]
    %v31 = vld [vmem:[%s0 + $0x18] sm:$0xf]
    %v32 = vld [vmem:[%s0 + $0x1c] sm:$0xf]
    %v33 = vld [vmem:[%s0 + $0x20] sm:$0xf]
    %v34 = vld [vmem:[%s0 + $0x24] sm:$0xf]
    %v35 = vld [vmem:[%s0 + $0x28] sm:$0xf]
    %v36 = vld [vmem:[%s0 + $0x2c] sm:$0xf]
    %v37 = vld [vmem:[%s0 + $0x30] sm:$0xf]
    %v38 = vld [vmem:[%s0 + $0x34] sm:$0xf]
    %v39 = vld [vmem:[%s0 + $0x38] sm:$0xf]
    %v40 = vld [vmem:[%s0 + $0x3c] sm:$0xf]
    %v41 = vld [vmem:[%s0 + $0x40] sm:$0xf]
    %v42 = vld [vmem:[%s0 + $0x44] sm:$0xf]
    %v43 = vld [vmem:[%s0 + $0x48] sm:$0xf]
    %v44 = vld [vmem:[%s0 + $0x4c] sm:$0xf]
    %v45 = vld [vmem:[%s0 + $0x50] sm:$0xf]
    %v46 = vld [vmem:[%s0 + $0x54] sm:$0xf]
    %v47 = vld [vmem:[%s0 + $0x58] sm:$0xf]
    %v48 = vld [vmem:[%s0 + $0x5c] sm:$0xf]
    %v49 = vld [vmem:[%s0 + $0x60] sm:$0xf]
    %v50 = vld [vmem:[%s0 + $0x64] sm:$0xf]
    %v51 = vld [vmem:[%s0 + $0x68] sm:$0xf]
    %v52 = vld [vmem:[%s0 + $0x6c] sm:$0xf]
    %v53 = vld [vmem:[%s0 + $0x70] sm:$0xf]
    %v54 = vld [vmem:[%s0 + $0x74] sm:$0xf]
    %v55 = vld [vmem:[%s0 + $0x78] sm:$0xf]
    %v56 = vld [vmem:[%s0 + $0x7c] sm:$0xf]
    %v57 = vld [vmem:[%s1] sm:$0xf]
    %v58 = vld [vmem:[%s1 + $0x4] sm:$0xf]
    %v59 = vld [vmem:[%s2] sm:$0x1]
    %v61 = vperm.slane %v59, 0
    %v95 = vunpack.c.l.b16 %v25
    %v96 = vunpack.c.l.b16 %v26
    %v97 = vunpack.c.l.b16 %v27
    %v98 = vunpack.c.l.b16 %v28
    %v99 = vunpack.c.l.b16 %v29
    %v100 = vunpack.c.l.b16 %v30
    %v101 = vunpack.c.l.b16 %v31
    %v102 = vunpack.c.l.b16 %v32
    %v103 = vunpack.c.l.b16 %v33
    %v104 = vunpack.c.l.b16 %v34
    %v105 = vunpack.c.l.b16 %v35
    %v106 = vunpack.c.l.b16 %v36
    %v107 = vunpack.c.l.b16 %v37
    %v108 = vunpack.c.l.b16 %v38
    %v109 = vunpack.c.l.b16 %v39
    %v110 = vunpack.c.l.b16 %v40
    %v111 = vunpack.c.l.b16 %v41
    %v112 = vunpack.c.l.b16 %v42
    %v113 = vunpack.c.l.b16 %v43
    %v114 = vunpack.c.l.b16 %v44
    %v115 = vunpack.c.l.b16 %v45
    %v116 = vunpack.c.l.b16 %v46
    %v117 = vunpack.c.l.b16 %v47
    %v118 = vunpack.c.l.b16 %v48
    %v119 = vunpack.c.l.b16 %v49
    %v120 = vunpack.c.l.b16 %v50
    %v121 = vunpack.c.l.b16 %v51
    %v122 = vunpack.c.l.b16 %v52
    %v123 = vunpack.c.l.b16 %v53
    %v124 = vunpack.c.l.b16 %v54
    %v125 = vunpack.c.l.b16 %v55
    %v126 = vunpack.c.l.b16 %v56
    %v127 = vpack.c.b16 %v96, %v95
    %v128 = vpack.c.b16 %v98, %v97
    %v129 = vpack.c.b16 %v100, %v99
    %v130 = vpack.c.b16 %v102, %v101
    %v131 = vpack.c.b16 %v104, %v103
    %v132 = vpack.c.b16 %v106, %v105
    %v133 = vpack.c.b16 %v108, %v107
    %v134 = vpack.c.b16 %v110, %v109
    %v135 = vpack.c.b16 %v112, %v111
    %v136 = vpack.c.b16 %v114, %v113
    %v137 = vpack.c.b16 %v116, %v115
    %v138 = vpack.c.b16 %v118, %v117
    %v139 = vpack.c.b16 %v120, %v119
    %v140 = vpack.c.b16 %v122, %v121
    %v141 = vpack.c.b16 %v124, %v123
    %v142 = vpack.c.b16 %v126, %v125
    %v145 = vunpack.c.l.b16 %v57
    %v146 = vunpack.c.l.b16 %v58
    %v147 = vpack.c.b16 %v146, %v145
    %vm149 = vcmask 130048
    %v151 = vsel %vm149, %v127, 0
    %v154 = vsel %vm149, %v128, 0
    %v157 = vsel %vm149, %v129, 0
    %v160 = vsel %vm149, %v130, 0
    %v163 = vsel %vm149, %v131, 0
    %v166 = vsel %vm149, %v132, 0
    %v169 = vsel %vm149, %v133, 0
    %v172 = vsel %vm149, %v134, 0
    %v175 = vsel %vm149, %v135, 0
    %v178 = vsel %vm149, %v136, 0
    %v181 = vsel %vm149, %v137, 0
    %v184 = vsel %vm149, %v138, 0
    %v187 = vsel %vm149, %v139, 0
    %v190 = vsel %vm149, %v140, 0
    %v193 = vsel %vm149, %v141, 0
    %v196 = vsel %vm149, %v142, 0
    %198 = vmatpush.bf16.msra.mxu0 0
    %199 = vmatpush.bf16.msra.mxu0 0
    %200 = vmatpush.bf16.msra.mxu0 0
    %201 = vmatpush.bf16.msra.mxu0 0
    %202 = vmatpush.bf16.msra.mxu0 0
    %203 = vmatpush.bf16.msra.mxu0 0
    %204 = vmatpush.bf16.msra.mxu0 0
    %205 = vmatpush.bf16.msra.mxu0 %v147
    %206 = vmatmul.bf16.gmra.mxu0 %v151
    %v207 = vpop.f32.mrf.mxu0
    %v208 = vadd.f32 %v61, %v207
    %v209 = vpop.f32.mrf.mxu0
    %v210 = vadd.f32 %v61, %v209
    %211 = vmatmul.bf16.gmra.mxu0 %v154
    %v212 = vpop.f32.mrf.mxu0
    %v213 = vadd.f32 %v61, %v212
    %v214 = vpop.f32.mrf.mxu0
    %v215 = vadd.f32 %v61, %v214
    %216 = vmatmul.bf16.gmra.mxu0 %v157
    %v217 = vpop.f32.mrf.mxu0
    %v218 = vadd.f32 %v61, %v217
    %v219 = vpop.f32.mrf.mxu0
    %v220 = vadd.f32 %v61, %v219
    %221 = vmatmul.bf16.gmra.mxu0 %v160
    %v222 = vpop.f32.mrf.mxu0
    %v223 = vadd.f32 %v61, %v222
    %v224 = vpop.f32.mrf.mxu0
    %v225 = vadd.f32 %v61, %v224
    %226 = vmatmul.bf16.gmra.mxu0 %v163
    %v227 = vpop.f32.mrf.mxu0
    %v228 = vadd.f32 %v61, %v227
    %v229 = vpop.f32.mrf.mxu0
    %v230 = vadd.f32 %v61, %v229
    %231 = vmatmul.bf16.gmra.mxu0 %v166
    %v232 = vpop.f32.mrf.mxu0
    %v233 = vadd.f32 %v61, %v232
    %v234 = vpop.f32.mrf.mxu0
    %v235 = vadd.f32 %v61, %v234
    %236 = vmatmul.bf16.gmra.mxu0 %v169
    %v237 = vpop.f32.mrf.mxu0
    %v238 = vadd.f32 %v61, %v237
    %v239 = vpop.f32.mrf.mxu0
    %v240 = vadd.f32 %v61, %v239
    %241 = vmatmul.bf16.gmra.mxu0 %v172
    %v242 = vpop.f32.mrf.mxu0
    %v243 = vadd.f32 %v61, %v242
    %v244 = vpop.f32.mrf.mxu0
    %v245 = vadd.f32 %v61, %v244
    %246 = vmatmul.bf16.gmra.mxu0 %v175
    %v247 = vpop.f32.mrf.mxu0
    %v248 = vadd.f32 %v61, %v247
    %v249 = vpop.f32.mrf.mxu0
    %v250 = vadd.f32 %v61, %v249
    %251 = vmatmul.bf16.gmra.mxu0 %v178
    %v252 = vpop.f32.mrf.mxu0
    %v253 = vadd.f32 %v61, %v252
    %v254 = vpop.f32.mrf.mxu0
    %v255 = vadd.f32 %v61, %v254
    %256 = vmatmul.bf16.gmra.mxu0 %v181
    %v257 = vpop.f32.mrf.mxu0
    %v258 = vadd.f32 %v61, %v257
    %v259 = vpop.f32.mrf.mxu0
    %v260 = vadd.f32 %v61, %v259
    %261 = vmatmul.bf16.gmra.mxu0 %v184
    %v262 = vpop.f32.mrf.mxu0
    %v263 = vadd.f32 %v61, %v262
    %v264 = vpop.f32.mrf.mxu0
    %v265 = vadd.f32 %v61, %v264
    %266 = vmatmul.bf16.gmra.mxu0 %v187
    %v267 = vpop.f32.mrf.mxu0
    %v268 = vadd.f32 %v61, %v267
    %v269 = vpop.f32.mrf.mxu0
    %v270 = vadd.f32 %v61, %v269
    %271 = vmatmul.bf16.gmra.mxu0 %v190
    %v272 = vpop.f32.mrf.mxu0
    %v273 = vadd.f32 %v61, %v272
    %v274 = vpop.f32.mrf.mxu0
    %v275 = vadd.f32 %v61, %v274
    %276 = vmatmul.bf16.gmra.mxu0 %v193
    %v277 = vpop.f32.mrf.mxu0
    %v278 = vadd.f32 %v61, %v277
    %v279 = vpop.f32.mrf.mxu0
    %v280 = vadd.f32 %v61, %v279
    %281 = vmatmul.bf16.gmra.mxu0 %v196
    %v282 = vpop.f32.mrf.mxu0
    %v283 = vadd.f32 %v61, %v282
    %v284 = vpop.f32.mrf.mxu0
    %v285 = vadd.f32 %v61, %v284
    %286 = vdwg.mxu0
    %v287 = vmax.f32 %v208, 0.0
    %v288 = vmax.f32 %v210, 0.0
    %v289 = vmax.f32 %v213, 0.0
    %v290 = vmax.f32 %v215, 0.0
    %v291 = vmax.f32 %v218, 0.0
    %v292 = vmax.f32 %v220, 0.0
    %v293 = vmax.f32 %v223, 0.0
    %v294 = vmax.f32 %v225, 0.0
    %v295 = vmax.f32 %v228, 0.0
    %v296 = vmax.f32 %v230, 0.0
    %v297 = vmax.f32 %v233, 0.0
    %v298 = vmax.f32 %v235, 0.0
    %v299 = vmax.f32 %v238, 0.0
    %v300 = vmax.f32 %v240, 0.0
    %v301 = vmax.f32 %v243, 0.0
    %v302 = vmax.f32 %v245, 0.0
    %v303 = vmax.f32 %v248, 0.0
    %v304 = vmax.f32 %v250, 0.0
    %v305 = vmax.f32 %v253, 0.0
    %v306 = vmax.f32 %v255, 0.0
    %v307 = vmax.f32 %v258, 0.0
    %v308 = vmax.f32 %v260, 0.0
    %v309 = vmax.f32 %v263, 0.0
    %v310 = vmax.f32 %v265, 0.0
    %v311 = vmax.f32 %v268, 0.0
    %v312 = vmax.f32 %v270, 0.0
    %v313 = vmax.f32 %v273, 0.0
    %v314 = vmax.f32 %v275, 0.0
    %v315 = vmax.f32 %v278, 0.0
    %v316 = vmax.f32 %v280, 0.0
    %v317 = vmax.f32 %v283, 0.0
    %v318 = vmax.f32 %v285, 0.0
    %v319 = vpack.c.bf16 %v287, %v287
    %v320 = vpack.c.bf16 %v288, %v288
    %v321 = vpack.c.bf16 %v289, %v289
    %v322 = vpack.c.bf16 %v290, %v290
    %v323 = vpack.c.bf16 %v291, %v291
    %v324 = vpack.c.bf16 %v292, %v292
    %v325 = vpack.c.bf16 %v293, %v293
    %v326 = vpack.c.bf16 %v294, %v294
    %v327 = vpack.c.bf16 %v295, %v295
    %v328 = vpack.c.bf16 %v296, %v296
    %v329 = vpack.c.bf16 %v297, %v297
    %v330 = vpack.c.bf16 %v298, %v298
    %v331 = vpack.c.bf16 %v299, %v299
    %v332 = vpack.c.bf16 %v300, %v300
    %v333 = vpack.c.bf16 %v301, %v301
    %v334 = vpack.c.bf16 %v302, %v302
    %v335 = vpack.c.bf16 %v303, %v303
    %v336 = vpack.c.bf16 %v304, %v304
    %v337 = vpack.c.bf16 %v305, %v305
    %v338 = vpack.c.bf16 %v306, %v306
    %v339 = vpack.c.bf16 %v307, %v307
    %v340 = vpack.c.bf16 %v308, %v308
    %v341 = vpack.c.bf16 %v309, %v309
    %v342 = vpack.c.bf16 %v310, %v310
    %v343 = vpack.c.bf16 %v311, %v311
    %v344 = vpack.c.bf16 %v312, %v312
    %v345 = vpack.c.bf16 %v313, %v313
    %v346 = vpack.c.bf16 %v314, %v314
    %v347 = vpack.c.bf16 %v315, %v315
    %v348 = vpack.c.bf16 %v316, %v316
    %v349 = vpack.c.bf16 %v317, %v317
    %v350 = vpack.c.bf16 %v318, %v318
    %351 = vst [vmem:[#allocation4] sm:$0xf] %v319
    %352 = vst [vmem:[#allocation4 + $0x4] sm:$0xf] %v320
    %353 = vst [vmem:[#allocation4 + $0x8] sm:$0xf] %v321
    %354 = vst [vmem:[#allocation4 + $0xc] sm:$0xf] %v322
    %355 = vst [vmem:[#allocation4 + $0x10] sm:$0xf] %v323
    %356 = vst [vmem:[#allocation4 + $0x14] sm:$0xf] %v324
    %357 = vst [vmem:[#allocation4 + $0x18] sm:$0xf] %v325
    %358 = vst [vmem:[#allocation4 + $0x1c] sm:$0xf] %v326
    %359 = vst [vmem:[#allocation4 + $0x20] sm:$0xf] %v327
    %360 = vst [vmem:[#allocation4 + $0x24] sm:$0xf] %v328
    %361 = vst [vmem:[#allocation4 + $0x28] sm:$0xf] %v329
    %362 = vst [vmem:[#allocation4 + $0x2c] sm:$0xf] %v330
    %363 = vst [vmem:[#allocation4 + $0x30] sm:$0xf] %v331
    %364 = vst [vmem:[#allocation4 + $0x34] sm:$0xf] %v332
    %365 = vst [vmem:[#allocation4 + $0x38] sm:$0xf] %v333
    %366 = vst [vmem:[#allocation4 + $0x3c] sm:$0xf] %v334
    %367 = vst [vmem:[#allocation4 + $0x40] sm:$0xf] %v335
    %368 = vst [vmem:[#allocation4 + $0x44] sm:$0xf] %v336
    %369 = vst [vmem:[#allocation4 + $0x48] sm:$0xf] %v337
    %370 = vst [vmem:[#allocation4 + $0x4c] sm:$0xf] %v338
    %371 = vst [vmem:[#allocation4 + $0x50] sm:$0xf] %v339
    %372 = vst [vmem:[#allocation4 + $0x54] sm:$0xf] %v340
    %373 = vst [vmem:[#allocation4 + $0x58] sm:$0xf] %v341
    %374 = vst [vmem:[#allocation4 + $0x5c] sm:$0xf] %v342
    %375 = vst [vmem:[#allocation4 + $0x60] sm:$0xf] %v343
    %376 = vst [vmem:[#allocation4 + $0x64] sm:$0xf] %v344
    %377 = vst [vmem:[#allocation4 + $0x68] sm:$0xf] %v345
    %378 = vst [vmem:[#allocation4 + $0x6c] sm:$0xf] %v346
    %379 = vst [vmem:[#allocation4 + $0x70] sm:$0xf] %v347
    %380 = vst [vmem:[#allocation4 + $0x74] sm:$0xf] %v348
    %381 = vst [vmem:[#allocation4 + $0x78] sm:$0xf] %v349
    %382 = vst [vmem:[#allocation4 + $0x7c] sm:$0xf] %v350
    %v383 = vld [vmem:[%s3] sm:$0xf]
    %v384 = vld [vmem:[%s3 + $0x4] sm:$0xf]
    %v385 = vld [vmem:[%s3 + $0x8] sm:$0xf]
    %v386 = vld [vmem:[%s3 + $0xc] sm:$0xf]
    %v387 = vld [vmem:[%s3 + $0x10] sm:$0xf]
    %v388 = vld [vmem:[%s3 + $0x14] sm:$0xf]
    %v389 = vld [vmem:[%s3 + $0x18] sm:$0xf]
    %v390 = vld [vmem:[%s3 + $0x1c] sm:$0xf]
    %v391 = vld [vmem:[%s3 + $0x20] sm:$0xf]
    %v392 = vld [vmem:[%s3 + $0x24] sm:$0xf]
    %v393 = vld [vmem:[%s3 + $0x28] sm:$0xf]
    %v394 = vld [vmem:[%s3 + $0x2c] sm:$0xf]
    %v395 = vld [vmem:[%s3 + $0x30] sm:$0xf]
    %v396 = vld [vmem:[%s3 + $0x34] sm:$0xf]
    %v397 = vld [vmem:[%s3 + $0x38] sm:$0xf]
    %v398 = vld [vmem:[%s3 + $0x3c] sm:$0xf]
    %v399 = vld [vmem:[%s4] sm:$0x1]
    %v401 = vperm.slane %v399, 0
    %v435 = vunpack.c.l.b16 %v319
    %v436 = vunpack.c.l.b16 %v320
    %v437 = vunpack.c.l.b16 %v321
    %v438 = vunpack.c.l.b16 %v322
    %v439 = vunpack.c.l.b16 %v323
    %v440 = vunpack.c.l.b16 %v324
    %v441 = vunpack.c.l.b16 %v325
    %v442 = vunpack.c.l.b16 %v326
    %v443 = vunpack.c.l.b16 %v327
    %v444 = vunpack.c.l.b16 %v328
    %v445 = vunpack.c.l.b16 %v329
    %v446 = vunpack.c.l.b16 %v330
    %v447 = vunpack.c.l.b16 %v331
    %v448 = vunpack.c.l.b16 %v332
    %v449 = vunpack.c.l.b16 %v333
    %v450 = vunpack.c.l.b16 %v334
    %v451 = vunpack.c.l.b16 %v335
    %v452 = vunpack.c.l.b16 %v336
    %v453 = vunpack.c.l.b16 %v337
    %v454 = vunpack.c.l.b16 %v338
    %v455 = vunpack.c.l.b16 %v339
    %v456 = vunpack.c.l.b16 %v340
    %v457 = vunpack.c.l.b16 %v341
    %v458 = vunpack.c.l.b16 %v342
    %v459 = vunpack.c.l.b16 %v343
    %v460 = vunpack.c.l.b16 %v344
    %v461 = vunpack.c.l.b16 %v345
    %v462 = vunpack.c.l.b16 %v346
    %v463 = vunpack.c.l.b16 %v347
    %v464 = vunpack.c.l.b16 %v348
    %v465 = vunpack.c.l.b16 %v349
    %v466 = vunpack.c.l.b16 %v350
    %v467 = vpack.c.b16 %v436, %v435
    %v468 = vpack.c.b16 %v438, %v437
    %v469 = vpack.c.b16 %v440, %v439
    %v470 = vpack.c.b16 %v442, %v441
    %v471 = vpack.c.b16 %v444, %v443
    %v472 = vpack.c.b16 %v446, %v445
    %v473 = vpack.c.b16 %v448, %v447
    %v474 = vpack.c.b16 %v450, %v449
    %v475 = vpack.c.b16 %v452, %v451
    %v476 = vpack.c.b16 %v454, %v453
    %v477 = vpack.c.b16 %v456, %v455
    %v478 = vpack.c.b16 %v458, %v457
    %v479 = vpack.c.b16 %v460, %v459
    %v480 = vpack.c.b16 %v462, %v461
    %v481 = vpack.c.b16 %v464, %v463
    %v482 = vpack.c.b16 %v466, %v465
    %v515 = vunpack.c.l.b16 %v383
    %v516 = vunpack.c.l.b16 %v384
    %v517 = vunpack.c.l.b16 %v385
    %v518 = vunpack.c.l.b16 %v386
    %v519 = vunpack.c.l.b16 %v387
    %v520 = vunpack.c.l.b16 %v388
    %v521 = vunpack.c.l.b16 %v389
    %v522 = vunpack.c.l.b16 %v390
    %v523 = vunpack.c.l.b16 %v391
    %v524 = vunpack.c.l.b16 %v392
    %v525 = vunpack.c.l.b16 %v393
    %v526 = vunpack.c.l.b16 %v394
    %v527 = vunpack.c.l.b16 %v395
    %v528 = vunpack.c.l.b16 %v396
    %v529 = vunpack.c.l.b16 %v397
    %v530 = vunpack.c.l.b16 %v398
    %v531 = vpack.c.b16 %v516, %v515
    %v532 = vpack.c.b16 %v518, %v517
    %v533 = vpack.c.b16 %v520, %v519
    %v534 = vpack.c.b16 %v522, %v521
    %v535 = vpack.c.b16 %v524, %v523
    %v536 = vpack.c.b16 %v526, %v525
    %v537 = vpack.c.b16 %v528, %v527
    %v538 = vpack.c.b16 %v530, %v529
    %547 = vmatpush.bf16.msra.mxu0 %v538
    %548 = vmatpush.bf16.msra.mxu0 %v537
    %549 = vmatpush.bf16.msra.mxu0 %v536
    %550 = vmatpush.bf16.msra.mxu0 %v535
    %551 = vmatpush.bf16.msra.mxu0 %v534
    %552 = vmatpush.bf16.msra.mxu0 %v533
    %553 = vmatpush.bf16.msra.mxu0 %v532
    %554 = vmatpush.bf16.msra.mxu0 %v531
    %555 = vmatmul.bf16.gmra.mxu0 %v467
    %v556 = vpop.f32.mrf.mxu0
    %v557 = vadd.f32 %v401, %v556
    %v558 = vpop.f32.mrf.mxu0
    %v559 = vadd.f32 %v401, %v558
    %560 = vmatmul.bf16.gmra.mxu0 %v468
    %v561 = vpop.f32.mrf.mxu0
    %v562 = vadd.f32 %v401, %v561
    %v563 = vpop.f32.mrf.mxu0
    %v564 = vadd.f32 %v401, %v563
    %565 = vmatmul.bf16.gmra.mxu0 %v469
    %v566 = vpop.f32.mrf.mxu0
    %v567 = vadd.f32 %v401, %v566
    %v568 = vpop.f32.mrf.mxu0
    %v569 = vadd.f32 %v401, %v568
    %570 = vmatmul.bf16.gmra.mxu0 %v470
    %v571 = vpop.f32.mrf.mxu0
    %v572 = vadd.f32 %v401, %v571
    %v573 = vpop.f32.mrf.mxu0
    %v574 = vadd.f32 %v401, %v573
    %575 = vmatmul.bf16.gmra.mxu0 %v471
    %v576 = vpop.f32.mrf.mxu0
    %v577 = vadd.f32 %v401, %v576
    %v578 = vpop.f32.mrf.mxu0
    %v579 = vadd.f32 %v401, %v578
    %580 = vmatmul.bf16.gmra.mxu0 %v472
    %v581 = vpop.f32.mrf.mxu0
    %v582 = vadd.f32 %v401, %v581
    %v583 = vpop.f32.mrf.mxu0
    %v584 = vadd.f32 %v401, %v583
    %585 = vmatmul.bf16.gmra.mxu0 %v473
    %v586 = vpop.f32.mrf.mxu0
    %v587 = vadd.f32 %v401, %v586
    %v588 = vpop.f32.mrf.mxu0
    %v589 = vadd.f32 %v401, %v588
    %590 = vmatmul.bf16.gmra.mxu0 %v474
    %v591 = vpop.f32.mrf.mxu0
    %v592 = vadd.f32 %v401, %v591
    %v593 = vpop.f32.mrf.mxu0
    %v594 = vadd.f32 %v401, %v593
    %595 = vmatmul.bf16.gmra.mxu0 %v475
    %v596 = vpop.f32.mrf.mxu0
    %v597 = vadd.f32 %v401, %v596
    %v598 = vpop.f32.mrf.mxu0
    %v599 = vadd.f32 %v401, %v598
    %600 = vmatmul.bf16.gmra.mxu0 %v476
    %v601 = vpop.f32.mrf.mxu0
    %v602 = vadd.f32 %v401, %v601
    %v603 = vpop.f32.mrf.mxu0
    %v604 = vadd.f32 %v401, %v603
    %605 = vmatmul.bf16.gmra.mxu0 %v477
    %v606 = vpop.f32.mrf.mxu0
    %v607 = vadd.f32 %v401, %v606
    %v608 = vpop.f32.mrf.mxu0
    %v609 = vadd.f32 %v401, %v608
    %610 = vmatmul.bf16.gmra.mxu0 %v478
    %v611 = vpop.f32.mrf.mxu0
    %v612 = vadd.f32 %v401, %v611
    %v613 = vpop.f32.mrf.mxu0
    %v614 = vadd.f32 %v401, %v613
    %615 = vmatmul.bf16.gmra.mxu0 %v479
    %v616 = vpop.f32.mrf.mxu0
    %v617 = vadd.f32 %v401, %v616
    %v618 = vpop.f32.mrf.mxu0
    %v619 = vadd.f32 %v401, %v618
    %620 = vmatmul.bf16.gmra.mxu0 %v480
    %v621 = vpop.f32.mrf.mxu0
    %v622 = vadd.f32 %v401, %v621
    %v623 = vpop.f32.mrf.mxu0
    %v624 = vadd.f32 %v401, %v623
    %625 = vmatmul.bf16.gmra.mxu0 %v481
    %v626 = vpop.f32.mrf.mxu0
    %v627 = vadd.f32 %v401, %v626
    %v628 = vpop.f32.mrf.mxu0
    %v629 = vadd.f32 %v401, %v628
    %630 = vmatmul.bf16.gmra.mxu0 %v482
    %v631 = vpop.f32.mrf.mxu0
    %v632 = vadd.f32 %v401, %v631
    %v633 = vpop.f32.mrf.mxu0
    %v634 = vadd.f32 %v401, %v633
    %635 = vdwg.mxu0
    %636 = vmax.xlane.f32.xlu0 %v557
    %v637 = vpop.xlane.xlu0 %636
    %638 = vmax.xlane.f32.xlu0 %v559
    %v639 = vpop.xlane.xlu0 %638
    %640 = vmax.xlane.f32.xlu0 %v562
    %v641 = vpop.xlane.xlu0 %640
    %642 = vmax.xlane.f32.xlu0 %v564
    %v643 = vpop.xlane.xlu0 %642
    %644 = vmax.xlane.f32.xlu0 %v567
    %v645 = vpop.xlane.xlu0 %644
    %646 = vmax.xlane.f32.xlu0 %v569
    %v647 = vpop.xlane.xlu0 %646
    %648 = vmax.xlane.f32.xlu0 %v572
    %v649 = vpop.xlane.xlu0 %648
    %650 = vmax.xlane.f32.xlu0 %v574
    %v651 = vpop.xlane.xlu0 %650
    %652 = vmax.xlane.f32.xlu0 %v577
    %v653 = vpop.xlane.xlu0 %652
    %654 = vmax.xlane.f32.xlu0 %v579
    %v655 = vpop.xlane.xlu0 %654
    %656 = vmax.xlane.f32.xlu0 %v582
    %v657 = vpop.xlane.xlu0 %656
    %658 = vmax.xlane.f32.xlu0 %v584
    %v659 = vpop.xlane.xlu0 %658
    %660 = vmax.xlane.f32.xlu0 %v587
    %v661 = vpop.xlane.xlu0 %660
    %662 = vmax.xlane.f32.xlu0 %v589
    %v663 = vpop.xlane.xlu0 %662
    %664 = vmax.xlane.f32.xlu0 %v592
    %v665 = vpop.xlane.xlu0 %664
    %666 = vmax.xlane.f32.xlu0 %v594
    %v667 = vpop.xlane.xlu0 %666
    %668 = vmax.xlane.f32.xlu0 %v597
    %v669 = vpop.xlane.xlu0 %668
    %670 = vmax.xlane.f32.xlu0 %v599
    %v671 = vpop.xlane.xlu0 %670
    %672 = vmax.xlane.f32.xlu0 %v602
    %v673 = vpop.xlane.xlu0 %672
    %674 = vmax.xlane.f32.xlu0 %v604
    %v675 = vpop.xlane.xlu0 %674
    %676 = vmax.xlane.f32.xlu0 %v607
    %v677 = vpop.xlane.xlu0 %676
    %678 = vmax.xlane.f32.xlu0 %v609
    %v679 = vpop.xlane.xlu0 %678
    %680 = vmax.xlane.f32.xlu0 %v612
    %v681 = vpop.xlane.xlu0 %680
    %682 = vmax.xlane.f32.xlu0 %v614
    %v683 = vpop.xlane.xlu0 %682
    %684 = vmax.xlane.f32.xlu0 %v617
    %v685 = vpop.xlane.xlu0 %684
    %686 = vmax.xlane.f32.xlu0 %v619
    %v687 = vpop.xlane.xlu0 %686
    %688 = vmax.xlane.f32.xlu0 %v622
    %v689 = vpop.xlane.xlu0 %688
    %690 = vmax.xlane.f32.xlu0 %v624
    %v691 = vpop.xlane.xlu0 %690
    %692 = vmax.xlane.f32.xlu0 %v627
    %v693 = vpop.xlane.xlu0 %692
    %694 = vmax.xlane.f32.xlu0 %v629
    %v695 = vpop.xlane.xlu0 %694
    %696 = vmax.xlane.f32.xlu0 %v632
    %v697 = vpop.xlane.xlu0 %696
    %698 = vmax.xlane.f32.xlu0 %v634
    %v699 = vpop.xlane.xlu0 %698
    %v700 = vsub.f32 %v557, %v637
    %v701 = vsub.f32 %v559, %v639
    %v702 = vsub.f32 %v562, %v641
    %v703 = vsub.f32 %v564, %v643
    %v704 = vsub.f32 %v567, %v645
    %v705 = vsub.f32 %v569, %v647
    %v706 = vsub.f32 %v572, %v649
    %v707 = vsub.f32 %v574, %v651
    %v708 = vsub.f32 %v577, %v653
    %v709 = vsub.f32 %v579, %v655
    %v710 = vsub.f32 %v582, %v657
    %v711 = vsub.f32 %v584, %v659
    %v712 = vsub.f32 %v587, %v661
    %v713 = vsub.f32 %v589, %v663
    %v714 = vsub.f32 %v592, %v665
    %v715 = vsub.f32 %v594, %v667
    %v716 = vsub.f32 %v597, %v669
    %v717 = vsub.f32 %v599, %v671
    %v718 = vsub.f32 %v602, %v673
    %v719 = vsub.f32 %v604, %v675
    %v720 = vsub.f32 %v607, %v677
    %v721 = vsub.f32 %v609, %v679
    %v722 = vsub.f32 %v612, %v681
    %v723 = vsub.f32 %v614, %v683
    %v724 = vsub.f32 %v617, %v685
    %v725 = vsub.f32 %v619, %v687
    %v726 = vsub.f32 %v622, %v689
    %v727 = vsub.f32 %v624, %v691
    %v728 = vsub.f32 %v627, %v693
    %v729 = vsub.f32 %v629, %v695
    %v730 = vsub.f32 %v632, %v697
    %v731 = vsub.f32 %v634, %v699
    %v732 = vmul.f32 %v700, 1.442695
    %v733 = vpow.pop %v732
    %v734 = vmul.f32 %v701, 1.442695
    %v735 = vpow.pop %v734
    %v736 = vmul.f32 %v702, 1.442695
    %v737 = vpow.pop %v736
    %v738 = vmul.f32 %v703, 1.442695
    %v739 = vpow.pop %v738
    %v740 = vmul.f32 %v704, 1.442695
    %v741 = vpow.pop %v740
    %v742 = vmul.f32 %v705, 1.442695
    %v743 = vpow.pop %v742
    %v744 = vmul.f32 %v706, 1.442695
    %v745 = vpow.pop %v744
    %v746 = vmul.f32 %v707, 1.442695
    %v747 = vpow.pop %v746
    %v748 = vmul.f32 %v708, 1.442695
    %v749 = vpow.pop %v748
    %v750 = vmul.f32 %v709, 1.442695
    %v751 = vpow.pop %v750
    %v752 = vmul.f32 %v710, 1.442695
    %v753 = vpow.pop %v752
    %v754 = vmul.f32 %v711, 1.442695
    %v755 = vpow.pop %v754
    %v756 = vmul.f32 %v712, 1.442695
    %v757 = vpow.pop %v756
    %v758 = vmul.f32 %v713, 1.442695
    %v759 = vpow.pop %v758
    %v760 = vmul.f32 %v714, 1.442695
    %v761 = vpow.pop %v760
    %v762 = vmul.f32 %v715, 1.442695
    %v763 = vpow.pop %v762
    %v764 = vmul.f32 %v716, 1.442695
    %v765 = vpow.pop %v764
    %v766 = vmul.f32 %v717, 1.442695
    %v767 = vpow.pop %v766
    %v768 = vmul.f32 %v718, 1.442695
    %v769 = vpow.pop %v768
    %v770 = vmul.f32 %v719, 1.442695
    %v771 = vpow.pop %v770
    %v772 = vmul.f32 %v720, 1.442695
    %v773 = vpow.pop %v772
    %v774 = vmul.f32 %v721, 1.442695
    %v775 = vpow.pop %v774
    %v776 = vmul.f32 %v722, 1.442695
    %v777 = vpow.pop %v776
    %v778 = vmul.f32 %v723, 1.442695
    %v779 = vpow.pop %v778
    %v780 = vmul.f32 %v724, 1.442695
    %v781 = vpow.pop %v780
    %v782 = vmul.f32 %v725, 1.442695
    %v783 = vpow.pop %v782
    %v784 = vmul.f32 %v726, 1.442695
    %v785 = vpow.pop %v784
    %v786 = vmul.f32 %v727, 1.442695
    %v787 = vpow.pop %v786
    %v788 = vmul.f32 %v728, 1.442695
    %v789 = vpow.pop %v788
    %v790 = vmul.f32 %v729, 1.442695
    %v791 = vpow.pop %v790
    %v792 = vmul.f32 %v730, 1.442695
    %v793 = vpow.pop %v792
    %v794 = vmul.f32 %v731, 1.442695
    %v795 = vpow.pop %v794
    %796 = vadd.xlane.f32.xlu0 %v733
    %v797 = vpop.xlane.xlu0 %796
    %798 = vadd.xlane.f32.xlu0 %v735
    %v799 = vpop.xlane.xlu0 %798
    %800 = vadd.xlane.f32.xlu0 %v737
    %v801 = vpop.xlane.xlu0 %800
    %802 = vadd.xlane.f32.xlu0 %v739
    %v803 = vpop.xlane.xlu0 %802
    %804 = vadd.xlane.f32.xlu0 %v741
    %v805 = vpop.xlane.xlu0 %804
    %806 = vadd.xlane.f32.xlu0 %v743
    %v807 = vpop.xlane.xlu0 %806
    %808 = vadd.xlane.f32.xlu0 %v745
    %v809 = vpop.xlane.xlu0 %808
    %810 = vadd.xlane.f32.xlu0 %v747
    %v811 = vpop.xlane.xlu0 %810
    %812 = vadd.xlane.f32.xlu0 %v749
    %v813 = vpop.xlane.xlu0 %812
    %814 = vadd.xlane.f32.xlu0 %v751
    %v815 = vpop.xlane.xlu0 %814
    %816 = vadd.xlane.f32.xlu0 %v753
    %v817 = vpop.xlane.xlu0 %816
    %818 = vadd.xlane.f32.xlu0 %v755
    %v819 = vpop.xlane.xlu0 %818
    %820 = vadd.xlane.f32.xlu0 %v757
    %v821 = vpop.xlane.xlu0 %820
    %822 = vadd.xlane.f32.xlu0 %v759
    %v823 = vpop.xlane.xlu0 %822
    %824 = vadd.xlane.f32.xlu0 %v761
    %v825 = vpop.xlane.xlu0 %824
    %826 = vadd.xlane.f32.xlu0 %v763
    %v827 = vpop.xlane.xlu0 %826
    %828 = vadd.xlane.f32.xlu0 %v765
    %v829 = vpop.xlane.xlu0 %828
    %830 = vadd.xlane.f32.xlu0 %v767
    %v831 = vpop.xlane.xlu0 %830
    %832 = vadd.xlane.f32.xlu0 %v769
    %v833 = vpop.xlane.xlu0 %832
    %834 = vadd.xlane.f32.xlu0 %v771
    %v835 = vpop.xlane.xlu0 %834
    %836 = vadd.xlane.f32.xlu0 %v773
    %v837 = vpop.xlane.xlu0 %836
    %838 = vadd.xlane.f32.xlu0 %v775
    %v839 = vpop.xlane.xlu0 %838
    %840 = vadd.xlane.f32.xlu0 %v777
    %v841 = vpop.xlane.xlu0 %840
    %842 = vadd.xlane.f32.xlu0 %v779
    %v843 = vpop.xlane.xlu0 %842
    %844 = vadd.xlane.f32.xlu0 %v781
    %v845 = vpop.xlane.xlu0 %844
    %846 = vadd.xlane.f32.xlu0 %v783
    %v847 = vpop.xlane.xlu0 %846
    %848 = vadd.xlane.f32.xlu0 %v785
    %v849 = vpop.xlane.xlu0 %848
    %850 = vadd.xlane.f32.xlu0 %v787
    %v851 = vpop.xlane.xlu0 %850
    %852 = vadd.xlane.f32.xlu0 %v789
    %v853 = vpop.xlane.xlu0 %852
    %854 = vadd.xlane.f32.xlu0 %v791
    %v855 = vpop.xlane.xlu0 %854
    %856 = vadd.xlane.f32.xlu0 %v793
    %v857 = vpop.xlane.xlu0 %856
    %858 = vadd.xlane.f32.xlu0 %v795
    %v859 = vpop.xlane.xlu0 %858
    %v860 = vrcp.pop %v797
    %v861 = vmul.f32 %v797, %v860
    %v862 = vsub.f32 1.0, %v861
    %v863 = vmul.f32 %v860, %v862
    %v864 = vadd.f32 %v860, %v863
    %vm865 = vweird.f32 %v797
    %vm866 = vweird.f32 %v860
    %vm867 = vmor %vm865, %vm866
    %v868 = vsel %vm867, %v860, %v864
    %v869 = vand.u32 2147483647, %v797
    %vm870 = vcmp.eq.f32.partialorder %v869, 8.507059e+37
    %v871 = vand.u32 %v797, 2147483648
    %v872 = vor.u32 1.1754944e-38, %v871
    %v873 = vsel %vm870, %v872, %v868
    %v874 = vmul.f32 %v733, %v873
    %v875 = vrcp.pop %v799
    %v876 = vmul.f32 %v799, %v875
    %v877 = vsub.f32 1.0, %v876
    %v878 = vmul.f32 %v875, %v877
    %v879 = vadd.f32 %v875, %v878
    %vm880 = vweird.f32 %v799
    %vm881 = vweird.f32 %v875
    %vm882 = vmor %vm880, %vm881
    %v883 = vsel %vm882, %v875, %v879
    %v884 = vand.u32 2147483647, %v799
    %vm885 = vcmp.eq.f32.partialorder %v884, 8.507059e+37
    %v886 = vand.u32 %v799, 2147483648
    %v887 = vor.u32 1.1754944e-38, %v886
    %v888 = vsel %vm885, %v887, %v883
    %v889 = vmul.f32 %v735, %v888
    %v890 = vrcp.pop %v801
    %v891 = vmul.f32 %v801, %v890
    %v892 = vsub.f32 1.0, %v891
    %v893 = vmul.f32 %v890, %v892
    %v894 = vadd.f32 %v890, %v893
    %vm895 = vweird.f32 %v801
    %vm896 = vweird.f32 %v890
    %vm897 = vmor %vm895, %vm896
    %v898 = vsel %vm897, %v890, %v894
    %v899 = vand.u32 2147483647, %v801
    %vm900 = vcmp.eq.f32.partialorder %v899, 8.507059e+37
    %v901 = vand.u32 %v801, 2147483648
    %v902 = vor.u32 1.1754944e-38, %v901
    %v903 = vsel %vm900, %v902, %v898
    %v904 = vmul.f32 %v737, %v903
    %v905 = vrcp.pop %v803
    %v906 = vmul.f32 %v803, %v905
    %v907 = vsub.f32 1.0, %v906
    %v908 = vmul.f32 %v905, %v907
    %v909 = vadd.f32 %v905, %v908
    %vm910 = vweird.f32 %v803
    %vm911 = vweird.f32 %v905
    %vm912 = vmor %vm910, %vm911
    %v913 = vsel %vm912, %v905, %v909
    %v914 = vand.u32 2147483647, %v803
    %vm915 = vcmp.eq.f32.partialorder %v914, 8.507059e+37
    %v916 = vand.u32 %v803, 2147483648
    %v917 = vor.u32 1.1754944e-38, %v916
    %v918 = vsel %vm915, %v917, %v913
    %v919 = vmul.f32 %v739, %v918
    %v920 = vrcp.pop %v805
    %v921 = vmul.f32 %v805, %v920
    %v922 = vsub.f32 1.0, %v921
    %v923 = vmul.f32 %v920, %v922
    %v924 = vadd.f32 %v920, %v923
    %vm925 = vweird.f32 %v805
    %vm926 = vweird.f32 %v920
    %vm927 = vmor %vm925, %vm926
    %v928 = vsel %vm927, %v920, %v924
    %v929 = vand.u32 2147483647, %v805
    %vm930 = vcmp.eq.f32.partialorder %v929, 8.507059e+37
    %v931 = vand.u32 %v805, 2147483648
    %v932 = vor.u32 1.1754944e-38, %v931
    %v933 = vsel %vm930, %v932, %v928
    %v934 = vmul.f32 %v741, %v933
    %v935 = vrcp.pop %v807
    %v936 = vmul.f32 %v807, %v935
    %v937 = vsub.f32 1.0, %v936
    %v938 = vmul.f32 %v935, %v937
    %v939 = vadd.f32 %v935, %v938
    %vm940 = vweird.f32 %v807
    %vm941 = vweird.f32 %v935
    %vm942 = vmor %vm940, %vm941
    %v943 = vsel %vm942, %v935, %v939
    %v944 = vand.u32 2147483647, %v807
    %vm945 = vcmp.eq.f32.partialorder %v944, 8.507059e+37
    %v946 = vand.u32 %v807, 2147483648
    %v947 = vor.u32 1.1754944e-38, %v946
    %v948 = vsel %vm945, %v947, %v943
    %v949 = vmul.f32 %v743, %v948
    %v950 = vrcp.pop %v809
    %v951 = vmul.f32 %v809, %v950
    %v952 = vsub.f32 1.0, %v951
    %v953 = vmul.f32 %v950, %v952
    %v954 = vadd.f32 %v950, %v953
    %vm955 = vweird.f32 %v809
    %vm956 = vweird.f32 %v950
    %vm957 = vmor %vm955, %vm956
    %v958 = vsel %vm957, %v950, %v954
    %v959 = vand.u32 2147483647, %v809
    %vm960 = vcmp.eq.f32.partialorder %v959, 8.507059e+37
    %v961 = vand.u32 %v809, 2147483648
    %v962 = vor.u32 1.1754944e-38, %v961
    %v963 = vsel %vm960, %v962, %v958
    %v964 = vmul.f32 %v745, %v963
    %v965 = vrcp.pop %v811
    %v966 = vmul.f32 %v811, %v965
    %v967 = vsub.f32 1.0, %v966
    %v968 = vmul.f32 %v965, %v967
    %v969 = vadd.f32 %v965, %v968
    %vm970 = vweird.f32 %v811
    %vm971 = vweird.f32 %v965
    %vm972 = vmor %vm970, %vm971
    %v973 = vsel %vm972, %v965, %v969
    %v974 = vand.u32 2147483647, %v811
    %vm975 = vcmp.eq.f32.partialorder %v974, 8.507059e+37
    %v976 = vand.u32 %v811, 2147483648
    %v977 = vor.u32 1.1754944e-38, %v976
    %v978 = vsel %vm975, %v977, %v973
    %v979 = vmul.f32 %v747, %v978
    %v980 = vrcp.pop %v813
    %v981 = vmul.f32 %v813, %v980
    %v982 = vsub.f32 1.0, %v981
    %v983 = vmul.f32 %v980, %v982
    %v984 = vadd.f32 %v980, %v983
    %vm985 = vweird.f32 %v813
    %vm986 = vweird.f32 %v980
    %vm987 = vmor %vm985, %vm986
    %v988 = vsel %vm987, %v980, %v984
    %v989 = vand.u32 2147483647, %v813
    %vm990 = vcmp.eq.f32.partialorder %v989, 8.507059e+37
    %v991 = vand.u32 %v813, 2147483648
    %v992 = vor.u32 1.1754944e-38, %v991
    %v993 = vsel %vm990, %v992, %v988
    %v994 = vmul.f32 %v749, %v993
    %v995 = vrcp.pop %v815
    %v996 = vmul.f32 %v815, %v995
    %v997 = vsub.f32 1.0, %v996
    %v998 = vmul.f32 %v995, %v997
    %v999 = vadd.f32 %v995, %v998
    %vm1000 = vweird.f32 %v815
    %vm1001 = vweird.f32 %v995
    %vm1002 = vmor %vm1000, %vm1001
    %v1003 = vsel %vm1002, %v995, %v999
    %v1004 = vand.u32 2147483647, %v815
    %vm1005 = vcmp.eq.f32.partialorder %v1004, 8.507059e+37
    %v1006 = vand.u32 %v815, 2147483648
    %v1007 = vor.u32 1.1754944e-38, %v1006
    %v1008 = vsel %vm1005, %v1007, %v1003
    %v1009 = vmul.f32 %v751, %v1008
    %v1010 = vrcp.pop %v817
    %v1011 = vmul.f32 %v817, %v1010
    %v1012 = vsub.f32 1.0, %v1011
    %v1013 = vmul.f32 %v1010, %v1012
    %v1014 = vadd.f32 %v1010, %v1013
    %vm1015 = vweird.f32 %v817
    %vm1016 = vweird.f32 %v1010
    %vm1017 = vmor %vm1015, %vm1016
    %v1018 = vsel %vm1017, %v1010, %v1014
    %v1019 = vand.u32 2147483647, %v817
    %vm1020 = vcmp.eq.f32.partialorder %v1019, 8.507059e+37
    %v1021 = vand.u32 %v817, 2147483648
    %v1022 = vor.u32 1.1754944e-38, %v1021
    %v1023 = vsel %vm1020, %v1022, %v1018
    %v1024 = vmul.f32 %v753, %v1023
    %v1025 = vrcp.pop %v819
    %v1026 = vmul.f32 %v819, %v1025
    %v1027 = vsub.f32 1.0, %v1026
    %v1028 = vmul.f32 %v1025, %v1027
    %v1029 = vadd.f32 %v1025, %v1028
    %vm1030 = vweird.f32 %v819
    %vm1031 = vweird.f32 %v1025
    %vm1032 = vmor %vm1030, %vm1031
    %v1033 = vsel %vm1032, %v1025, %v1029
    %v1034 = vand.u32 2147483647, %v819
    %vm1035 = vcmp.eq.f32.partialorder %v1034, 8.507059e+37
    %v1036 = vand.u32 %v819, 2147483648
    %v1037 = vor.u32 1.1754944e-38, %v1036
    %v1038 = vsel %vm1035, %v1037, %v1033
    %v1039 = vmul.f32 %v755, %v1038
    %v1040 = vrcp.pop %v821
    %v1041 = vmul.f32 %v821, %v1040
    %v1042 = vsub.f32 1.0, %v1041
    %v1043 = vmul.f32 %v1040, %v1042
    %v1044 = vadd.f32 %v1040, %v1043
    %vm1045 = vweird.f32 %v821
    %vm1046 = vweird.f32 %v1040
    %vm1047 = vmor %vm1045, %vm1046
    %v1048 = vsel %vm1047, %v1040, %v1044
    %v1049 = vand.u32 2147483647, %v821
    %vm1050 = vcmp.eq.f32.partialorder %v1049, 8.507059e+37
    %v1051 = vand.u32 %v821, 2147483648
    %v1052 = vor.u32 1.1754944e-38, %v1051
    %v1053 = vsel %vm1050, %v1052, %v1048
    %v1054 = vmul.f32 %v757, %v1053
    %v1055 = vrcp.pop %v823
    %v1056 = vmul.f32 %v823, %v1055
    %v1057 = vsub.f32 1.0, %v1056
    %v1058 = vmul.f32 %v1055, %v1057
    %v1059 = vadd.f32 %v1055, %v1058
    %vm1060 = vweird.f32 %v823
    %vm1061 = vweird.f32 %v1055
    %vm1062 = vmor %vm1060, %vm1061
    %v1063 = vsel %vm1062, %v1055, %v1059
    %v1064 = vand.u32 2147483647, %v823
    %vm1065 = vcmp.eq.f32.partialorder %v1064, 8.507059e+37
    %v1066 = vand.u32 %v823, 2147483648
    %v1067 = vor.u32 1.1754944e-38, %v1066
    %v1068 = vsel %vm1065, %v1067, %v1063
    %v1069 = vmul.f32 %v759, %v1068
    %v1070 = vrcp.pop %v825
    %v1071 = vmul.f32 %v825, %v1070
    %v1072 = vsub.f32 1.0, %v1071
    %v1073 = vmul.f32 %v1070, %v1072
    %v1074 = vadd.f32 %v1070, %v1073
    %vm1075 = vweird.f32 %v825
    %vm1076 = vweird.f32 %v1070
    %vm1077 = vmor %vm1075, %vm1076
    %v1078 = vsel %vm1077, %v1070, %v1074
    %v1079 = vand.u32 2147483647, %v825
    %vm1080 = vcmp.eq.f32.partialorder %v1079, 8.507059e+37
    %v1081 = vand.u32 %v825, 2147483648
    %v1082 = vor.u32 1.1754944e-38, %v1081
    %v1083 = vsel %vm1080, %v1082, %v1078
    %v1084 = vmul.f32 %v761, %v1083
    %v1085 = vrcp.pop %v827
    %v1086 = vmul.f32 %v827, %v1085
    %v1087 = vsub.f32 1.0, %v1086
    %v1088 = vmul.f32 %v1085, %v1087
    %v1089 = vadd.f32 %v1085, %v1088
    %vm1090 = vweird.f32 %v827
    %vm1091 = vweird.f32 %v1085
    %vm1092 = vmor %vm1090, %vm1091
    %v1093 = vsel %vm1092, %v1085, %v1089
    %v1094 = vand.u32 2147483647, %v827
    %vm1095 = vcmp.eq.f32.partialorder %v1094, 8.507059e+37
    %v1096 = vand.u32 %v827, 2147483648
    %v1097 = vor.u32 1.1754944e-38, %v1096
    %v1098 = vsel %vm1095, %v1097, %v1093
    %v1099 = vmul.f32 %v763, %v1098
    %v1100 = vrcp.pop %v829
    %v1101 = vmul.f32 %v829, %v1100
    %v1102 = vsub.f32 1.0, %v1101
    %v1103 = vmul.f32 %v1100, %v1102
    %v1104 = vadd.f32 %v1100, %v1103
    %vm1105 = vweird.f32 %v829
    %vm1106 = vweird.f32 %v1100
    %vm1107 = vmor %vm1105, %vm1106
    %v1108 = vsel %vm1107, %v1100, %v1104
    %v1109 = vand.u32 2147483647, %v829
    %vm1110 = vcmp.eq.f32.partialorder %v1109, 8.507059e+37
    %v1111 = vand.u32 %v829, 2147483648
    %v1112 = vor.u32 1.1754944e-38, %v1111
    %v1113 = vsel %vm1110, %v1112, %v1108
    %v1114 = vmul.f32 %v765, %v1113
    %v1115 = vrcp.pop %v831
    %v1116 = vmul.f32 %v831, %v1115
    %v1117 = vsub.f32 1.0, %v1116
    %v1118 = vmul.f32 %v1115, %v1117
    %v1119 = vadd.f32 %v1115, %v1118
    %vm1120 = vweird.f32 %v831
    %vm1121 = vweird.f32 %v1115
    %vm1122 = vmor %vm1120, %vm1121
    %v1123 = vsel %vm1122, %v1115, %v1119
    %v1124 = vand.u32 2147483647, %v831
    %vm1125 = vcmp.eq.f32.partialorder %v1124, 8.507059e+37
    %v1126 = vand.u32 %v831, 2147483648
    %v1127 = vor.u32 1.1754944e-38, %v1126
    %v1128 = vsel %vm1125, %v1127, %v1123
    %v1129 = vmul.f32 %v767, %v1128
    %v1130 = vrcp.pop %v833
    %v1131 = vmul.f32 %v833, %v1130
    %v1132 = vsub.f32 1.0, %v1131
    %v1133 = vmul.f32 %v1130, %v1132
    %v1134 = vadd.f32 %v1130, %v1133
    %vm1135 = vweird.f32 %v833
    %vm1136 = vweird.f32 %v1130
    %vm1137 = vmor %vm1135, %vm1136
    %v1138 = vsel %vm1137, %v1130, %v1134
    %v1139 = vand.u32 2147483647, %v833
    %vm1140 = vcmp.eq.f32.partialorder %v1139, 8.507059e+37
    %v1141 = vand.u32 %v833, 2147483648
    %v1142 = vor.u32 1.1754944e-38, %v1141
    %v1143 = vsel %vm1140, %v1142, %v1138
    %v1144 = vmul.f32 %v769, %v1143
    %v1145 = vrcp.pop %v835
    %v1146 = vmul.f32 %v835, %v1145
    %v1147 = vsub.f32 1.0, %v1146
    %v1148 = vmul.f32 %v1145, %v1147
    %v1149 = vadd.f32 %v1145, %v1148
    %vm1150 = vweird.f32 %v835
    %vm1151 = vweird.f32 %v1145
    %vm1152 = vmor %vm1150, %vm1151
    %v1153 = vsel %vm1152, %v1145, %v1149
    %v1154 = vand.u32 2147483647, %v835
    %vm1155 = vcmp.eq.f32.partialorder %v1154, 8.507059e+37
    %v1156 = vand.u32 %v835, 2147483648
    %v1157 = vor.u32 1.1754944e-38, %v1156
    %v1158 = vsel %vm1155, %v1157, %v1153
    %v1159 = vmul.f32 %v771, %v1158
    %v1160 = vrcp.pop %v837
    %v1161 = vmul.f32 %v837, %v1160
    %v1162 = vsub.f32 1.0, %v1161
    %v1163 = vmul.f32 %v1160, %v1162
    %v1164 = vadd.f32 %v1160, %v1163
    %vm1165 = vweird.f32 %v837
    %vm1166 = vweird.f32 %v1160
    %vm1167 = vmor %vm1165, %vm1166
    %v1168 = vsel %vm1167, %v1160, %v1164
    %v1169 = vand.u32 2147483647, %v837
    %vm1170 = vcmp.eq.f32.partialorder %v1169, 8.507059e+37
    %v1171 = vand.u32 %v837, 2147483648
    %v1172 = vor.u32 1.1754944e-38, %v1171
    %v1173 = vsel %vm1170, %v1172, %v1168
    %v1174 = vmul.f32 %v773, %v1173
    %v1175 = vrcp.pop %v839
    %v1176 = vmul.f32 %v839, %v1175
    %v1177 = vsub.f32 1.0, %v1176
    %v1178 = vmul.f32 %v1175, %v1177
    %v1179 = vadd.f32 %v1175, %v1178
    %vm1180 = vweird.f32 %v839
    %vm1181 = vweird.f32 %v1175
    %vm1182 = vmor %vm1180, %vm1181
    %v1183 = vsel %vm1182, %v1175, %v1179
    %v1184 = vand.u32 2147483647, %v839
    %vm1185 = vcmp.eq.f32.partialorder %v1184, 8.507059e+37
    %v1186 = vand.u32 %v839, 2147483648
    %v1187 = vor.u32 1.1754944e-38, %v1186
    %v1188 = vsel %vm1185, %v1187, %v1183
    %v1189 = vmul.f32 %v775, %v1188
    %v1190 = vrcp.pop %v841
    %v1191 = vmul.f32 %v841, %v1190
    %v1192 = vsub.f32 1.0, %v1191
    %v1193 = vmul.f32 %v1190, %v1192
    %v1194 = vadd.f32 %v1190, %v1193
    %vm1195 = vweird.f32 %v841
    %vm1196 = vweird.f32 %v1190
    %vm1197 = vmor %vm1195, %vm1196
    %v1198 = vsel %vm1197, %v1190, %v1194
    %v1199 = vand.u32 2147483647, %v841
    %vm1200 = vcmp.eq.f32.partialorder %v1199, 8.507059e+37
    %v1201 = vand.u32 %v841, 2147483648
    %v1202 = vor.u32 1.1754944e-38, %v1201
    %v1203 = vsel %vm1200, %v1202, %v1198
    %v1204 = vmul.f32 %v777, %v1203
    %v1205 = vrcp.pop %v843
    %v1206 = vmul.f32 %v843, %v1205
    %v1207 = vsub.f32 1.0, %v1206
    %v1208 = vmul.f32 %v1205, %v1207
    %v1209 = vadd.f32 %v1205, %v1208
    %vm1210 = vweird.f32 %v843
    %vm1211 = vweird.f32 %v1205
    %vm1212 = vmor %vm1210, %vm1211
    %v1213 = vsel %vm1212, %v1205, %v1209
    %v1214 = vand.u32 2147483647, %v843
    %vm1215 = vcmp.eq.f32.partialorder %v1214, 8.507059e+37
    %v1216 = vand.u32 %v843, 2147483648
    %v1217 = vor.u32 1.1754944e-38, %v1216
    %v1218 = vsel %vm1215, %v1217, %v1213
    %v1219 = vmul.f32 %v779, %v1218
    %v1220 = vrcp.pop %v845
    %v1221 = vmul.f32 %v845, %v1220
    %v1222 = vsub.f32 1.0, %v1221
    %v1223 = vmul.f32 %v1220, %v1222
    %v1224 = vadd.f32 %v1220, %v1223
    %vm1225 = vweird.f32 %v845
    %vm1226 = vweird.f32 %v1220
    %vm1227 = vmor %vm1225, %vm1226
    %v1228 = vsel %vm1227, %v1220, %v1224
    %v1229 = vand.u32 2147483647, %v845
    %vm1230 = vcmp.eq.f32.partialorder %v1229, 8.507059e+37
    %v1231 = vand.u32 %v845, 2147483648
    %v1232 = vor.u32 1.1754944e-38, %v1231
    %v1233 = vsel %vm1230, %v1232, %v1228
    %v1234 = vmul.f32 %v781, %v1233
    %v1235 = vrcp.pop %v847
    %v1236 = vmul.f32 %v847, %v1235
    %v1237 = vsub.f32 1.0, %v1236
    %v1238 = vmul.f32 %v1235, %v1237
    %v1239 = vadd.f32 %v1235, %v1238
    %vm1240 = vweird.f32 %v847
    %vm1241 = vweird.f32 %v1235
    %vm1242 = vmor %vm1240, %vm1241
    %v1243 = vsel %vm1242, %v1235, %v1239
    %v1244 = vand.u32 2147483647, %v847
    %vm1245 = vcmp.eq.f32.partialorder %v1244, 8.507059e+37
    %v1246 = vand.u32 %v847, 2147483648
    %v1247 = vor.u32 1.1754944e-38, %v1246
    %v1248 = vsel %vm1245, %v1247, %v1243
    %v1249 = vmul.f32 %v783, %v1248
    %v1250 = vrcp.pop %v849
    %v1251 = vmul.f32 %v849, %v1250
    %v1252 = vsub.f32 1.0, %v1251
    %v1253 = vmul.f32 %v1250, %v1252
    %v1254 = vadd.f32 %v1250, %v1253
    %vm1255 = vweird.f32 %v849
    %vm1256 = vweird.f32 %v1250
    %vm1257 = vmor %vm1255, %vm1256
    %v1258 = vsel %vm1257, %v1250, %v1254
    %v1259 = vand.u32 2147483647, %v849
    %vm1260 = vcmp.eq.f32.partialorder %v1259, 8.507059e+37
    %v1261 = vand.u32 %v849, 2147483648
    %v1262 = vor.u32 1.1754944e-38, %v1261
    %v1263 = vsel %vm1260, %v1262, %v1258
    %v1264 = vmul.f32 %v785, %v1263
    %v1265 = vrcp.pop %v851
    %v1266 = vmul.f32 %v851, %v1265
    %v1267 = vsub.f32 1.0, %v1266
    %v1268 = vmul.f32 %v1265, %v1267
    %v1269 = vadd.f32 %v1265, %v1268
    %vm1270 = vweird.f32 %v851
    %vm1271 = vweird.f32 %v1265
    %vm1272 = vmor %vm1270, %vm1271
    %v1273 = vsel %vm1272, %v1265, %v1269
    %v1274 = vand.u32 2147483647, %v851
    %vm1275 = vcmp.eq.f32.partialorder %v1274, 8.507059e+37
    %v1276 = vand.u32 %v851, 2147483648
    %v1277 = vor.u32 1.1754944e-38, %v1276
    %v1278 = vsel %vm1275, %v1277, %v1273
    %v1279 = vmul.f32 %v787, %v1278
    %v1280 = vrcp.pop %v853
    %v1281 = vmul.f32 %v853, %v1280
    %v1282 = vsub.f32 1.0, %v1281
    %v1283 = vmul.f32 %v1280, %v1282
    %v1284 = vadd.f32 %v1280, %v1283
    %vm1285 = vweird.f32 %v853
    %vm1286 = vweird.f32 %v1280
    %vm1287 = vmor %vm1285, %vm1286
    %v1288 = vsel %vm1287, %v1280, %v1284
    %v1289 = vand.u32 2147483647, %v853
    %vm1290 = vcmp.eq.f32.partialorder %v1289, 8.507059e+37
    %v1291 = vand.u32 %v853, 2147483648
    %v1292 = vor.u32 1.1754944e-38, %v1291
    %v1293 = vsel %vm1290, %v1292, %v1288
    %v1294 = vmul.f32 %v789, %v1293
    %v1295 = vrcp.pop %v855
    %v1296 = vmul.f32 %v855, %v1295
    %v1297 = vsub.f32 1.0, %v1296
    %v1298 = vmul.f32 %v1295, %v1297
    %v1299 = vadd.f32 %v1295, %v1298
    %vm1300 = vweird.f32 %v855
    %vm1301 = vweird.f32 %v1295
    %vm1302 = vmor %vm1300, %vm1301
    %v1303 = vsel %vm1302, %v1295, %v1299
    %v1304 = vand.u32 2147483647, %v855
    %vm1305 = vcmp.eq.f32.partialorder %v1304, 8.507059e+37
    %v1306 = vand.u32 %v855, 2147483648
    %v1307 = vor.u32 1.1754944e-38, %v1306
    %v1308 = vsel %vm1305, %v1307, %v1303
    %v1309 = vmul.f32 %v791, %v1308
    %v1310 = vrcp.pop %v857
    %v1311 = vmul.f32 %v857, %v1310
    %v1312 = vsub.f32 1.0, %v1311
    %v1313 = vmul.f32 %v1310, %v1312
    %v1314 = vadd.f32 %v1310, %v1313
    %vm1315 = vweird.f32 %v857
    %vm1316 = vweird.f32 %v1310
    %vm1317 = vmor %vm1315, %vm1316
    %v1318 = vsel %vm1317, %v1310, %v1314
    %v1319 = vand.u32 2147483647, %v857
    %vm1320 = vcmp.eq.f32.partialorder %v1319, 8.507059e+37
    %v1321 = vand.u32 %v857, 2147483648
    %v1322 = vor.u32 1.1754944e-38, %v1321
    %v1323 = vsel %vm1320, %v1322, %v1318
    %v1324 = vmul.f32 %v793, %v1323
    %v1325 = vrcp.pop %v859
    %v1326 = vmul.f32 %v859, %v1325
    %v1327 = vsub.f32 1.0, %v1326
    %v1328 = vmul.f32 %v1325, %v1327
    %v1329 = vadd.f32 %v1325, %v1328
    %vm1330 = vweird.f32 %v859
    %vm1331 = vweird.f32 %v1325
    %vm1332 = vmor %vm1330, %vm1331
    %v1333 = vsel %vm1332, %v1325, %v1329
    %v1334 = vand.u32 2147483647, %v859
    %vm1335 = vcmp.eq.f32.partialorder %v1334, 8.507059e+37
    %v1336 = vand.u32 %v859, 2147483648
    %v1337 = vor.u32 1.1754944e-38, %v1336
    %v1338 = vsel %vm1335, %v1337, %v1333
    %v1339 = vmul.f32 %v795, %v1338
    %1340 = vst [vmem:[#allocation2] sm:$0xff] %v874
    %1341 = vst [vmem:[#allocation2 + $0x8] sm:$0xff] %v889
    %1342 = vst [vmem:[#allocation2 + $0x10] sm:$0xff] %v904
    %1343 = vst [vmem:[#allocation2 + $0x18] sm:$0xff] %v919
    %1344 = vst [vmem:[#allocation2 + $0x20] sm:$0xff] %v934
    %1345 = vst [vmem:[#allocation2 + $0x28] sm:$0xff] %v949
    %1346 = vst [vmem:[#allocation2 + $0x30] sm:$0xff] %v964
    %1347 = vst [vmem:[#allocation2 + $0x38] sm:$0xff] %v979
    %1348 = vst [vmem:[#allocation2 + $0x40] sm:$0xff] %v994
    %1349 = vst [vmem:[#allocation2 + $0x48] sm:$0xff] %v1009
    %1350 = vst [vmem:[#allocation2 + $0x50] sm:$0xff] %v1024
    %1351 = vst [vmem:[#allocation2 + $0x58] sm:$0xff] %v1039
    %1352 = vst [vmem:[#allocation2 + $0x60] sm:$0xff] %v1054
    %1353 = vst [vmem:[#allocation2 + $0x68] sm:$0xff] %v1069
    %1354 = vst [vmem:[#allocation2 + $0x70] sm:$0xff] %v1084
    %1355 = vst [vmem:[#allocation2 + $0x78] sm:$0xff] %v1099
    %1356 = vst [vmem:[#allocation2 + $0x80] sm:$0xff] %v1114
    %1357 = vst [vmem:[#allocation2 + $0x88] sm:$0xff] %v1129
    %1358 = vst [vmem:[#allocation2 + $0x90] sm:$0xff] %v1144
    %1359 = vst [vmem:[#allocation2 + $0x98] sm:$0xff] %v1159
    %1360 = vst [vmem:[#allocation2 + $0xa0] sm:$0xff] %v1174
    %1361 = vst [vmem:[#allocation2 + $0xa8] sm:$0xff] %v1189
    %1362 = vst [vmem:[#allocation2 + $0xb0] sm:$0xff] %v1204
    %1363 = vst [vmem:[#allocation2 + $0xb8] sm:$0xff] %v1219
    %1364 = vst [vmem:[#allocation2 + $0xc0] sm:$0xff] %v1234
    %1365 = vst [vmem:[#allocation2 + $0xc8] sm:$0xff] %v1249
    %1366 = vst [vmem:[#allocation2 + $0xd0] sm:$0xff] %v1264
    %1367 = vst [vmem:[#allocation2 + $0xd8] sm:$0xff] %v1279
    %1368 = vst [vmem:[#allocation2 + $0xe0] sm:$0xff] %v1294
    %1369 = vst [vmem:[#allocation2 + $0xe8] sm:$0xff] %v1309
    %1370 = vst [vmem:[#allocation2 + $0xf0] sm:$0xff] %v1324
    %1371 = vst [vmem:[#allocation2 + $0xf8] sm:$0xff] %v1339
    // Predicated region
    $region22: #{tpu_custom_call.1} parent=1 // pred_check
      _
    $region23: #{tpu_custom_call.1} parent=1 // pred_check_branch
      %1373 = sbr.rel (0) target = $region25
    $region24: #{tpu_custom_call.1} parent=1 // pred_region
      %1375 = vsyncadd [#allocation3], 0
      %s1376 = sshll.u32 [#allocation2], 4
      %s1377 = int_to_ptr.vmem [resolvable:$true] %s1376
      %s1378 = sshll.u32 %s5, 4
      %s1379 = int_to_ptr.hbm [resolvable:$true] %s1378
      %1384 = dma.vmem_to_hbm [thread:$0]  %s1377, 4096, %s1379, [#allocation3], 128, 128, 8
    $region25: #{tpu_custom_call.1} parent=1 // pred_fallthru
      _
    // Predicated region
    $region26: #{tpu_custom_call.1} parent=1 // pred_check
      _
    $region27: #{tpu_custom_call.1} parent=1 // pred_check_branch
      %1386 = sbr.rel (0) target = $region29
    $region28: #{tpu_custom_call.1} parent=1 // pred_region
      %1388 = vsyncadd [#allocation5], 0
      %s1389 = sshll.u32 [#allocation4], 4
      %s1390 = int_to_ptr.vmem [resolvable:$true] %s1389
      %s1391 = sshll.u32 %s6, 4
      %s1392 = int_to_ptr.hbm [resolvable:$true] %s1391
      %1397 = dma.vmem_to_hbm [thread:$0]  %s1390, 2048, %s1392, [#allocation5], 64, 64, 4
    $region29: #{tpu_custom_call.1} parent=1 // pred_fallthru
      _
    // Predicated region
    $region30: #{tpu_custom_call.1} parent=1 // pred_check
      _
    $region31: #{tpu_custom_call.1} parent=1 // pred_check_branch
      %1399 = sbr.rel (0) target = $region33
    $region32: #{tpu_custom_call.1} parent=1 // pred_region
      %1401 = dma.done [#allocation3], 4096
    $region33: #{tpu_custom_call.1} parent=1 // pred_fallthru
      _
    // Predicated region
    $region34: #{tpu_custom_call.1} parent=1 // pred_check
      _
    $region35: #{tpu_custom_call.1} parent=1 // pred_check_branch
      %1403 = sbr.rel (0) target = $region37
    $region36: #{tpu_custom_call.1} parent=1 // pred_region
      %1405 = dma.done [#allocation5], 2048
    $region37: #{tpu_custom_call.1} parent=1 // pred_fallthru
      _
    %1406 = vsyncpa [#allocation3], 1
    %1407 = vsyncpa [#allocation5], 1

</llo_original>
